<compile_context>
chip_gen: v5e
topology: v5e:2x2
jax: 0.10.0
libtpu: 0.0.40
codegen_flags: <defaults>
</compile_context>

<pallas_src>
import jax
import jax.numpy as jnp
from jax import lax
from jax.experimental import pallas as pl
from jax.experimental.pallas import tpu as pltpu


def _round_up(v, m):
    return ((v + m - 1) // m) * m


def _output_process_kernel(x_ref, w_ref, b_ref, o_ref):
    # x_ref: (tbj, tf, d)   activation tile (joint-rows x frames x latent)
    # w_ref: (N, d)         Linear weight, resident (N == 128)
    # b_ref: (N, 1)         bias column, resident
    # o_ref: (tbj, N, tf)   output tile, already in permuted (feature, frame) layout
    tbj, tf, d = x_ref.shape
    n = w_ref.shape[0]
    w = w_ref[...]
    bias = b_ref[...]                                   # (N, 1)

    if tbj == 1 or tf % 8 == 0:
        # Fused path: one long MXU push for the whole tile.
        # (tbj, tf, d) -> (tbj*tf, d) is layout-preserving when tf % 8 == 0
        # (and trivially when tbj == 1).
        xf = x_ref[...].reshape(tbj * tf, d)
        acc = lax.dot_general(
            w, xf,
            dimension_numbers=(((1,), (1,)), ((), ())),
            preferred_element_type=jnp.float32,
        )                                               # (N, tbj*tf), f32 accum
        y = (acc + bias).astype(o_ref.dtype)            # single bias-add + cast
        if tbj == 1:
            o_ref[0] = y
        else:
            for bb in range(tbj):                       # static lane slices
                o_ref[bb] = y[:, bb * tf:(bb + 1) * tf]
    else:
        # Fallback (tf not a multiple of 8, tbj > 1): per-row matmuls, but the
        # bias broadcast is hoisted out of the loop (JAX does not CSE it).
        bias_tile = jnp.broadcast_to(bias, (n, tf))
        for bb in range(tbj):
            acc = lax.dot_general(
                w, x_ref[bb],
                dimension_numbers=(((1,), (1,)), ((), ())),
                preferred_element_type=jnp.float32,
            )                                           # (N, tf)
            o_ref[bb] = (acc + bias_tile).astype(o_ref.dtype)


def _out_block_budget_bytes():
    # Generation-aware output-block budget: v5e/v6e have 128 MiB physical VMEM
    # per core, v7x only 64 MiB.  Conservative default if the query fails.
    try:
        cap = pltpu.get_tpu_info().vmem_capacity_bytes
    except Exception:
        cap = 64 << 20
    return (4 << 20) if cap >= (96 << 20) else (2 << 20)


def _pick_tiles(bj, nframes, d, n_feats, in_itemsize, out_itemsize):
    # Frame tile must be the full frame dim or a multiple of 128 (output block
    # (tbj, 128, tf) last-dim constraint).  Prefer lane-dense tf >= 128.
    if nframes < 128:
        tf = nframes
    elif nframes % 128 == 0 and nframes <= 1024:
        tf = nframes
    else:
        tf = min(512, 128 * (nframes // 128))

    budget = _out_block_budget_bytes()
    per_row_out = n_feats * _round_up(tf, 128) * out_itemsize            # lane-padded tf<128
    per_row_x = _round_up(tf, 8) * _round_up(d, 128) * in_itemsize        # K<128 -> 4x lane pad
    tbj = max(1, min(bj, 32, budget // max(per_row_out + per_row_x, 1)))
    if tf % 8 != 0:
        tbj = min(tbj, 16)   # per-row fallback path: bound the static unroll

    # Keep >= ~8 grid steps so the BlockSpec pipeline overlaps DMA/compute and
    # both v7x TensorCores get several iterations each.
    def _steps(tb, t_f):
        return pl.cdiv(bj, tb) * pl.cdiv(nframes, t_f)

    while tbj > 1 and _steps(tbj, tf) < 8:
        tbj = max(1, tbj // 2)
    while tf >= 256 and tf % 256 == 0 and _steps(tbj, tf) < 8:
        tf //= 2
    return tbj, tf


def _vmem_estimate_bytes(tbj, tf, d, n_feats, in_itemsize, out_itemsize):
    x_blk = tbj * _round_up(tf, 8) * _round_up(d, 128) * in_itemsize      # lane-padded
    out_blk = tbj * n_feats * _round_up(tf, 128) * out_itemsize
    temps = 2 * n_feats * _round_up(tbj * tf, 128) * 4                     # f32 acc + cast copy
    resident = n_feats * _round_up(d, 128) * 4 + n_feats * 128 * 4         # w + bias
    return 2 * x_blk + 2 * out_blk + temps + resident


def output_process_pallas(x, w, b, *, joint_tile=None, frame_tile=None):
    """Pallas implementation of OutputProcess.forward.

    x: (bs, n_joints, nframes, latent_dim)
    w: (input_feats, latent_dim)  -- input_feats == 128 (hardcoded in the reshape)
    b: (input_feats,)
    returns: (bs, n_joints * 128, 1, nframes)
    """
    bs, n_joints, nframes, d = x.shape
    n_feats = w.shape[0]
    if w.shape[1] != d:
        raise ValueError(f"weight last dim {w.shape[1]} != latent_dim {d}")
    if n_feats != 128:
        raise ValueError("OutputProcess.forward hardcodes 128 output features in its reshape")

    bj = bs * n_joints
    x3 = x.reshape(bj, nframes, d)          # contiguous reshape, no copy
    b2 = b.reshape(n_feats, 1)

    auto_tbj, auto_tf = _pick_tiles(bj, nframes, d, n_feats,
                                    x.dtype.itemsize, x.dtype.itemsize)
    tbj = int(joint_tile) if joint_tile is not None else auto_tbj
    tf = int(frame_tile) if frame_tile is not None else auto_tf

    # Validate tiles against the (8,128) BlockSpec constraint (robustness).
    if not (1 <= tbj <= bj):
        raise ValueError(f"joint_tile must be in [1, {bj}], got {tbj}")
    if not (1 <= tf <= nframes) or (tf != nframes and tf % 128 != 0):
        raise ValueError(
            f"frame_tile must equal nframes ({nframes}) or be a multiple of 128, got {tf}")

    out_bytes = bj * n_feats * nframes * x.dtype.itemsize
    cost = pl.CostEstimate(
        flops=int(2 * bj * nframes * n_feats * d),
        transcendentals=0,
        bytes_accessed=int(x.nbytes + w.nbytes + b.nbytes + out_bytes),
    )
    vmem_need = _vmem_estimate_bytes(tbj, tf, d, n_feats,
                                     x.dtype.itemsize, x.dtype.itemsize)
    vmem_limit = int(min(max(2 * vmem_need, 16 << 20), 48 << 20))  # safe on v5e/v6e/v7x

    y = pl.pallas_call(
        _output_process_kernel,
        out_shape=jax.ShapeDtypeStruct((bj, n_feats, nframes), x.dtype),
        grid_spec=pltpu.PrefetchScalarGridSpec(
            num_scalar_prefetch=0,
            grid=(pl.cdiv(bj, tbj), pl.cdiv(nframes, tf)),
            in_specs=[
                pl.BlockSpec((tbj, tf, d), lambda i, j: (i, j, 0)),
                pl.BlockSpec((n_feats, d), lambda i, j: (0, 0)),
                pl.BlockSpec((n_feats, 1), lambda i, j: (0, 0)),
            ],
            out_specs=pl.BlockSpec((tbj, n_feats, tf), lambda i, j: (i, 0, j)),
        ),
        compiler_params=pltpu.CompilerParams(
            dimension_semantics=("parallel", "parallel"),
            vmem_limit_bytes=vmem_limit,
        ),
        cost_estimate=cost,
    )(x3, w, b2)

    # (bj, 128, nframes) row-major is exactly (bs, n_joints*128, 1, nframes):
    # this reshape is free (no data movement).
    return y.reshape(bs, n_joints * n_feats, 1, nframes)


def output_process(x, w, b, *, joint_tile=None, frame_tile=None, force_pallas=False):
    """Public wrapper: tiny problems use XLA's fused GEMM; otherwise Pallas."""
    bs, n_joints, nframes, d = x.shape
    n_feats = w.shape[0]
    if n_feats != 128:
        raise ValueError("OutputProcess.forward hardcodes 128 output features in its reshape")
    out_bytes = bs * n_joints * n_feats * nframes * x.dtype.itemsize
    if (not force_pallas and joint_tile is None and frame_tile is None
            and out_bytes < (256 << 10)):
        y = jnp.einsum("bjfd,nd->bjnf", x, w) + b[None, None, :, None]
        return y.reshape(bs, n_joints * n_feats, 1, nframes)
    return output_process_pallas(x, w, b, joint_tile=joint_tile, frame_tile=frame_tile)


def _torch_reference(x, w, b):
    bs, n_joints, nframes, _ = x.shape
    y = jnp.einsum("bjfd,nd->bjfn", x, w, precision=lax.Precision.HIGHEST) + b
    return jnp.transpose(y, (0, 1, 3, 2)).reshape(bs, n_joints * 128, 1, nframes)


if __name__ == "__main__":
    # Small shapes consistent with the module: input_feats = 128 (required by
    # the hardcoded reshape), latent_dim = 32.
    bs, n_joints, nframes, latent_dim = 2, 4, 8, 32
    input_feats = 128

    key = jax.random.PRNGKey(0)
    kx, kw, kb = jax.random.split(key, 3)
    x = jax.random.normal(kx, (bs, n_joints, nframes, latent_dim), dtype=jnp.float32)

    # PyTorch Linear default init: U(-1/sqrt(fan_in), 1/sqrt(fan_in)).
    bound = 1.0 / (latent_dim ** 0.5)
    w = jax.random.uniform(kw, (input_feats, latent_dim), jnp.float32, -bound, bound)
    b = jax.random.uniform(kb, (input_feats,), jnp.float32, -bound, bound)

    ref = _torch_reference(x, w, b)

    # 1) Pallas path with auto tiles.
    out = jax.block_until_ready(output_process(x, w, b, force_pallas=True))
    assert out.shape == (bs, n_joints * 128, 1, nframes)
    assert jnp.allclose(out, ref, atol=5e-3, rtol=5e-3)

    # 2) Pallas path with a multi-row tile (exercises the single fused matmul
    #    + static lane-sliced stores).
    out2 = jax.block_until_ready(
        output_process(x, w, b, force_pallas=True, joint_tile=4, frame_tile=nframes))
    assert jnp.allclose(out2, ref, atol=5e-3, rtol=5e-3)

    # 3) Frame count not a multiple of 8 (exercises the per-row fallback path).
    x6 = x[:, :, :6, :]
    ref6 = _torch_reference(x6, w, b)
    out3 = jax.block_until_ready(
        output_process(x6, w, b, force_pallas=True, joint_tile=4, frame_tile=6))
    assert jnp.allclose(out3, ref6, atol=5e-3, rtol=5e-3)

    # 4) Default wrapper (tiny-shape einsum fallback).
    out4 = jax.block_until_ready(output_process(x, w, b))
    assert jnp.allclose(out4, ref, atol=5e-3, rtol=5e-3)

    print("KERNEL_OK")
</pallas_src>

<mosaic_0001>
module attributes {stable_mosaic.version = 11 : i64} {
  func.func @_output_process_kernel(%arg0: i32, %arg1: i32, %arg2: memref<1x8x32xf32, #tpu.memory_space<vmem>>, %arg3: memref<128x32xf32, #tpu.memory_space<vmem>>, %arg4: memref<128x1xf32, #tpu.memory_space<vmem>>, %arg5: memref<1x128x8xf32, #tpu.memory_space<vmem>>) attributes {dimension_semantics = [#tpu.dimension_semantics<parallel>, #tpu.dimension_semantics<parallel>], iteration_bounds = array<i64: 8, 1>, scalar_prefetch = 0 : i64, scratch_operands = 0 : i64, tpu.core_type = #tpu.core_type<tc>, window_params = [{transform_indices = @transform_0, window_bounds = array<i64: 1, 8, 32>}, {pipeline_mode = #tpu.pipeline_mode<synchronous>, transform_indices = @transform_1, window_bounds = array<i64: 128, 32>}, {pipeline_mode = #tpu.pipeline_mode<synchronous>, transform_indices = @transform_2, window_bounds = array<i64: 128, 1>}, {transform_indices = @transform_3, window_bounds = array<i64: 1, 128, 8>}]} {
    %c0 = arith.constant 0 : index
    %c0_0 = arith.constant 0 : index
    %0 = vector.load %arg3[%c0, %c0_0] : memref<128x32xf32, #tpu.memory_space<vmem>>, vector<128x32xf32>
    %c0_1 = arith.constant 0 : index
    %c0_2 = arith.constant 0 : index
    %1 = vector.load %arg4[%c0_1, %c0_2] : memref<128x1xf32, #tpu.memory_space<vmem>>, vector<128x1xf32>
    %c0_3 = arith.constant 0 : index
    %c0_4 = arith.constant 0 : index
    %c0_5 = arith.constant 0 : index
    %2 = vector.load %arg2[%c0_3, %c0_4, %c0_5] : memref<1x8x32xf32, #tpu.memory_space<vmem>>, vector<1x8x32xf32>
    %3 = vector.shape_cast %2 : vector<1x8x32xf32> to vector<8x32xf32>
    %cst = arith.constant dense<0.000000e+00> : vector<128x8xf32>
    %4 = tpu.matmul %0, %3, %cst {dimension_numbers = #tpu.dot_dimension_numbers<[1], [1], [0], [0], [0, 0, 1, 0], [], []>} : vector<128x32xf32>, vector<8x32xf32>, vector<128x8xf32> -> vector<128x8xf32>
    %5 = vector.broadcast %1 : vector<128x1xf32> to vector<128x8xf32>
    %6 = arith.addf %4, %5 : vector<128x8xf32>
    %c0_6 = arith.constant 0 : index
    %c0_7 = arith.constant 0 : index
    %c0_8 = arith.constant 0 : index
    %7 = vector.load %arg5[%c0_6, %c0_7, %c0_8] : memref<1x128x8xf32, #tpu.memory_space<vmem>>, vector<1x128x8xf32>
    %8 = vector.shape_cast %7 : vector<1x128x8xf32> to vector<128x8xf32>
    %9 = vector.shape_cast %6 : vector<128x8xf32> to vector<1x128x8xf32>
    tpu.vector_store %arg5[%c0_6, %c0_7, %c0_8], %9 {strides = array<i32>} : memref<1x128x8xf32, #tpu.memory_space<vmem>>, vector<1x128x8xf32>,
    return
  }
  func.func @transform_0(%arg0: i32, %arg1: i32) -> (i32, i32, i32) {
    %c0_i32 = arith.constant 0 : i32
    %c0_i32_0 = arith.constant 0 : i32
    return %arg0, %arg1, %c0_i32 : i32, i32, i32
  }
  func.func @transform_1(%arg0: i32, %arg1: i32) -> (i32, i32) {
    %c0_i32 = arith.constant 0 : i32
    %c0_i32_0 = arith.constant 0 : i32
    %c0_i32_1 = arith.constant 0 : i32
    return %c0_i32, %c0_i32_0 : i32, i32
  }
  func.func @transform_2(%arg0: i32, %arg1: i32) -> (i32, i32) {
    %c0_i32 = arith.constant 0 : i32
    %c0_i32_0 = arith.constant 0 : i32
    %c0_i32_1 = arith.constant 0 : i32
    return %c0_i32, %c0_i32_0 : i32, i32
  }
  func.func @transform_3(%arg0: i32, %arg1: i32) -> (i32, i32, i32) {
    %c0_i32 = arith.constant 0 : i32
    %c0_i32_0 = arith.constant 0 : i32
    return %arg0, %c0_i32, %arg1 : i32, i32, i32
  }
}

</mosaic_0001>

<llo_original>
// kernel: tpu_custom_call.1
$region0: #{tpu_custom_call.1}
  #allocation0 [shape = 'u32[]', space=smem, size = 0x4, offset = 0x4, fixed_abs, tag = 'smem constant byte address 0x4 - core index']
  #allocation1 [shape = 'u32[72,128]{1,0:T(1,128)}', space=vmem, size = 0x9000, scoped, tag = 'internal scratch']
  %s0 = inlined_call_operand.vmem [shape: f32[8,8,32], index: 0, kind: input, shape index: {}]
  %s1 = inlined_call_operand.vmem [shape: f32[128,32], index: 1, kind: input, shape index: {}]
  %s2 = inlined_call_operand.vmem [shape: f32[128,1], index: 2, kind: input, shape index: {}]
  %s3 = inlined_call_operand.vmem [shape: f32[8,128,8], index: 3, kind: output, shape index: {}]
  %s4 = sld [smem:[#allocation0]]
  $region45: #{tpu_custom_call.1} parent=0
    _
  %s6 = ssub.s32 1, %s4
  %s7 = scalar_select 0, %s6, %s4
  loop: start=0, step=1, limit=10
  $region2: #{tpu_custom_call.1} parent=0 // loop_pre_header
    _
  $region3: #{tpu_custom_call.1} parent=0 // loop_header
    %s9 = sphi 0, %s13
    %p10 = scmp.ge.s32.totalorder %s9, 10
    %s16 = sphi 0, %s28
    %s17 = sphi 0, %s24
    %s18 = sphi 0, %s16
    %s19 = sphi 0, %s17
    %s20 = sphi 0, %s18
    %s21 = sphi 0, %s19
    %s33 = sphi 0, %s35
    %s36 = sphi 0, %s33
    %s37 = sphi 0, %s36
    %s53 = sphi 0, %s37
    %s57 = sphi 0, %s57
    %s59 = sphi 0, %s57
    %s60 = sphi 0, %s59
    %s74 = sphi 0, %s60
    %s78 = sphi 0, %s78
    %s80 = sphi 0, %s78
    %s81 = sphi 0, %s80
    %s95 = sphi 0, %s81
    %s103 = sphi 0, %s105
    %s106 = sphi 0, %s103
    %s107 = sphi 0, %s106
    %s123 = sphi 0, %s107
  $region4: #{tpu_custom_call.1} parent=0 // loop_header_branch
    %12 = sbr.rel (%p10) target = $region8
  $region5: #{tpu_custom_call.1} parent=0 // loop_body
    %s14 = ssub.s32 %s9, 1
    %s15 = ssub.s32 %s9, 2
    %s22 = sadd.s32 1, %s17
    %p23 = scmp.ge.s32.totalorder %s22, 1
    %s24 = scalar_select %p23, 0, %s22
    %s25 = sadd.s32 1, %s16
    %s26 = scalar_select %p23, %s25, %s16
    %p27 = scmp.ge.s32.totalorder %s26, 8
    %s28 = scalar_select %p27, 0, %s26
    %s29 = ssub.s32 %s16, %s28
    %s30 = ssub.s32 %s17, %s24
    %s31 = sor.u32 %s29, %s30
    %p32 = scmp.eq.s32.totalorder %s31, 0
    %s34 = sadd.s32 %s33, 1
    %s35 = scalar_select %p32, %s33, %s34
    %p38 = pneg %p32
    %p39 = scmp.eq.s32.totalorder %s9, 7
    %p40 = por %p38, %p39
    %p41 = scmp.ne.s32.totalorder %s33, %s36
    %p42 = scmp.eq.s32.totalorder %s9, 0
    %p43 = por %p41, %p42
    %p44 = scmp.ne.s32.totalorder %s33, %s36
    %p45 = scmp.eq.s32.totalorder %s14, 7
    %p46 = por %p44, %p45
    %p47 = scmp.ne.s32.totalorder %s36, %s37
    %p48 = scmp.eq.s32.totalorder %s14, 0
    %p49 = por %p47, %p48
    %p50 = scmp.ne.s32.totalorder %s36, %s37
    %p51 = scmp.eq.s32.totalorder %s15, 7
    %p52 = por %p50, %p51
    %p54 = scmp.ne.s32.totalorder %s37, %s53
    %p55 = scmp.eq.s32.totalorder %s15, 0
    %p56 = por %p54, %p55
    %s58 = sadd.s32 %s57, 1
    %p61 = scmp.eq.s32.totalorder %s9, 7
    %p62 = scmp.ne.s32.totalorder %s57, %s59
    %p63 = scmp.eq.s32.totalorder %s9, 0
    %p64 = por %p62, %p63
    %p65 = scmp.ne.s32.totalorder %s57, %s59
    %p66 = scmp.eq.s32.totalorder %s14, 7
    %p67 = por %p65, %p66
    %p68 = scmp.ne.s32.totalorder %s59, %s60
    %p69 = scmp.eq.s32.totalorder %s14, 0
    %p70 = por %p68, %p69
    %p71 = scmp.ne.s32.totalorder %s59, %s60
    %p72 = scmp.eq.s32.totalorder %s15, 7
    %p73 = por %p71, %p72
    %p75 = scmp.ne.s32.totalorder %s60, %s74
    %p76 = scmp.eq.s32.totalorder %s15, 0
    %p77 = por %p75, %p76
    %s79 = sadd.s32 %s78, 1
    %p82 = scmp.eq.s32.totalorder %s9, 7
    %p83 = scmp.ne.s32.totalorder %s78, %s80
    %p84 = scmp.eq.s32.totalorder %s9, 0
    %p85 = por %p83, %p84
    %p86 = scmp.ne.s32.totalorder %s78, %s80
    %p87 = scmp.eq.s32.totalorder %s14, 7
    %p88 = por %p86, %p87
    %p89 = scmp.ne.s32.totalorder %s80, %s81
    %p90 = scmp.eq.s32.totalorder %s14, 0
    %p91 = por %p89, %p90
    %p92 = scmp.ne.s32.totalorder %s80, %s81
    %p93 = scmp.eq.s32.totalorder %s15, 7
    %p94 = por %p92, %p93
    %p96 = scmp.ne.s32.totalorder %s81, %s95
    %p97 = scmp.eq.s32.totalorder %s15, 0
    %p98 = por %p96, %p97
    %s99 = ssub.s32 %s16, %s28
    %s100 = ssub.s32 %s17, %s24
    %s101 = sor.u32 %s99, %s100
    %p102 = scmp.eq.s32.totalorder %s101, 0
    %s104 = sadd.s32 %s103, 1
    %s105 = scalar_select %p102, %s103, %s104
    %p108 = pneg %p102
    %p109 = scmp.eq.s32.totalorder %s9, 7
    %p110 = por %p108, %p109
    %p111 = scmp.ne.s32.totalorder %s103, %s106
    %p112 = scmp.eq.s32.totalorder %s9, 0
    %p113 = por %p111, %p112
    %p114 = scmp.ne.s32.totalorder %s103, %s106
    %p115 = scmp.eq.s32.totalorder %s14, 7
    %p116 = por %p114, %p115
    %p117 = scmp.ne.s32.totalorder %s106, %s107
    %p118 = scmp.eq.s32.totalorder %s14, 0
    %p119 = por %p117, %p118
    %p120 = scmp.ne.s32.totalorder %s106, %s107
    %p121 = scmp.eq.s32.totalorder %s15, 7
    %p122 = por %p120, %p121
    %p124 = scmp.ne.s32.totalorder %s107, %s123
    %p125 = scmp.eq.s32.totalorder %s15, 0
    %p126 = por %p124, %p125
    %p127 = scmp.le.s32.totalorder 1, %s9
    %p128 = scmp.lt.s32.totalorder %s9, 9
    %p129 = pnand %p127, %p128
    %p130 = pneg %p129
    // Predicated region
    $region9: #{tpu_custom_call.1} parent=5 // pred_check
      _
    $region10: #{tpu_custom_call.1} parent=5 // pred_check_branch
      %132 = sbr.rel (%p129) target = $region12
    $region11: #{tpu_custom_call.1} parent=5 // pred_region
      %s133 = ssub.s32 %s9, 1
      // Predicated region
      $region13: #{tpu_custom_call.1} parent=11 // pred_check
        %p134 = pneg %p70
      $region14: #{tpu_custom_call.1} parent=11 // pred_check_branch
        %136 = sbr.rel (%p134) target = $region16
      $region15: #{tpu_custom_call.1} parent=11 // pred_region
        _
      $region16: #{tpu_custom_call.1} parent=11 // pred_fallthru
        _
      // Predicated region
      $region17: #{tpu_custom_call.1} parent=11 // pred_check
        %p137 = pneg %p91
      $region18: #{tpu_custom_call.1} parent=11 // pred_check_branch
        %139 = sbr.rel (%p137) target = $region20
      $region19: #{tpu_custom_call.1} parent=11 // pred_region
        _
      $region20: #{tpu_custom_call.1} parent=11 // pred_fallthru
        _
    $region12: #{tpu_custom_call.1} parent=5 // pred_fallthru
      _
    %p140 = scmp.lt.s32.totalorder %s9, 8
    // Predicated region
    $region21: #{tpu_custom_call.1} parent=5 // pred_check
      %p141 = pneg %p140
    $region22: #{tpu_custom_call.1} parent=5 // pred_check_branch
      %143 = sbr.rel (%p141) target = $region24
    $region23: #{tpu_custom_call.1} parent=5 // pred_region
      // Predicated region
      $region25: #{tpu_custom_call.1} parent=23 // pred_check
        %p144 = pneg %p43
      $region26: #{tpu_custom_call.1} parent=23 // pred_check_branch
        %146 = sbr.rel (%p144) target = $region28
      $region27: #{tpu_custom_call.1} parent=23 // pred_region
        %p147 = scmp.lt.s32.totalorder %s16, 7
        %s148 = scalar_select %p147, %s16, 7
        %p149 = scmp.lt.s32.totalorder %s17, 0
        %s150 = scalar_select %p149, %s17, 0
        %s151 = sadd.s32 %s150, %s148
        %s152 = smul.addr %s151, 8
        %s153 = scalar_lea.vmem %s0, %s152
      $region28: #{tpu_custom_call.1} parent=23 // pred_fallthru
        _
    $region24: #{tpu_custom_call.1} parent=5 // pred_fallthru
      _
    %p154 = scmp.le.s32.totalorder 1, %s9
    %p155 = scmp.lt.s32.totalorder %s9, 9
    %p156 = pnand %p154, %p155
    %p157 = pneg %p156
    // Predicated region
    $region29: #{tpu_custom_call.1} parent=5 // pred_check
      _
    $region30: #{tpu_custom_call.1} parent=5 // pred_check_branch
      %159 = sbr.rel (%p156) target = $region32
    $region31: #{tpu_custom_call.1} parent=5 // pred_region
      %s160 = ssub.s32 %s9, 1
      %p161 = scmp.lt.s32.totalorder %s18, 7
      %s162 = scalar_select %p161, %s18, 7
      %p163 = scmp.lt.s32.totalorder %s19, 0
      %s164 = scalar_select %p163, %s19, 0
      %s165 = sadd.s32 %s164, %s162
      %s166 = smul.addr %s165, 8
      %s167 = scalar_lea.vmem %s0, %s166
      %p168 = pneg %p49
      %p169 = pneg %p46
      %p170 = pneg %p70
      %p171 = pneg %p67
      %p172 = pneg %p91
      %p173 = pneg %p88
      %p174 = pneg %p119
      %p175 = pneg %p116
      %p176 = scmp.lt.s32.totalorder %s18, 7
      %s177 = scalar_select %p176, %s18, 7
      %p178 = scmp.lt.s32.totalorder %s19, 0
      %s179 = scalar_select %p178, %s19, 0
      %s180 = smul.addr %s177, 16
      %s181 = sadd.s32 %s179, %s180
      %s182 = smul.addr %s181, 8
      %s183 = scalar_lea.vmem %s3, %s182
      %p184 = scmp.lt.s32.totalorder %s18, 7
      %s185 = scalar_select %p184, %s18, 7
      %p186 = scmp.lt.s32.totalorder %s19, 0
      %s187 = scalar_select %p186, %s19, 0
      %s188 = sadd.s32 %s187, %s185
      %s189 = smul.addr %s188, 8
      %s190 = scalar_lea.vmem %s0, %s189
      %p191 = scmp.lt.s32.totalorder %s18, 7
      %s192 = scalar_select %p191, %s18, 7
      %p193 = scmp.lt.s32.totalorder %s19, 0
      %s194 = scalar_select %p193, %s19, 0
      %s195 = smul.addr %s192, 16
      %s196 = sadd.s32 %s194, %s195
      %s197 = smul.addr %s196, 8
      %s198 = scalar_lea.vmem %s3, %s197
      %v199 = vld [vmem:[%s1] sm:$0xff]
      %v200 = vld [vmem:[%s1 + $0x8] sm:$0xff]
      %v201 = vld [vmem:[%s1 + $0x10] sm:$0xff]
      %v202 = vld [vmem:[%s1 + $0x18] sm:$0xff]
      %v203 = vld [vmem:[%s1 + $0x20] sm:$0xff]
      %v204 = vld [vmem:[%s1 + $0x28] sm:$0xff]
      %v205 = vld [vmem:[%s1 + $0x30] sm:$0xff]
      %v206 = vld [vmem:[%s1 + $0x38] sm:$0xff]
      %v207 = vld [vmem:[%s1 + $0x40] sm:$0xff]
      %v208 = vld [vmem:[%s1 + $0x48] sm:$0xff]
      %v209 = vld [vmem:[%s1 + $0x50] sm:$0xff]
      %v210 = vld [vmem:[%s1 + $0x58] sm:$0xff]
      %v211 = vld [vmem:[%s1 + $0x60] sm:$0xff]
      %v212 = vld [vmem:[%s1 + $0x68] sm:$0xff]
      %v213 = vld [vmem:[%s1 + $0x70] sm:$0xff]
      %v214 = vld [vmem:[%s1 + $0x78] sm:$0xff]
      %v215 = vld [vmem:[%s2] sm:$0xff]
      %v216 = vld [vmem:[%s2 + $0x8] sm:$0xff]
      %v217 = vld [vmem:[%s2 + $0x10] sm:$0xff]
      %v218 = vld [vmem:[%s2 + $0x18] sm:$0xff]
      %v219 = vld [vmem:[%s2 + $0x20] sm:$0xff]
      %v220 = vld [vmem:[%s2 + $0x28] sm:$0xff]
      %v221 = vld [vmem:[%s2 + $0x30] sm:$0xff]
      %v222 = vld [vmem:[%s2 + $0x38] sm:$0xff]
      %v223 = vld [vmem:[%s2 + $0x40] sm:$0xff]
      %v224 = vld [vmem:[%s2 + $0x48] sm:$0xff]
      %v225 = vld [vmem:[%s2 + $0x50] sm:$0xff]
      %v226 = vld [vmem:[%s2 + $0x58] sm:$0xff]
      %v227 = vld [vmem:[%s2 + $0x60] sm:$0xff]
      %v228 = vld [vmem:[%s2 + $0x68] sm:$0xff]
      %v229 = vld [vmem:[%s2 + $0x70] sm:$0xff]
      %v230 = vld [vmem:[%s2 + $0x78] sm:$0xff]
      %v231 = vld [vmem:[%s190] sm:$0xff]
      %233 = vset.pattern.permute.xlu0 0
      %234 = vperm.xlu0 %233, %v215
      %v235 = vpop.permute.xlu0 %234
      %238 = vset.pattern.permute.xlu0 0
      %239 = vperm.xlu0 %238, %v216
      %v240 = vpop.permute.xlu0 %239
      %243 = vset.pattern.permute.xlu0 0
      %244 = vperm.xlu0 %243, %v217
      %v245 = vpop.permute.xlu0 %244
      %248 = vset.pattern.permute.xlu0 0
      %249 = vperm.xlu0 %248, %v218
      %v250 = vpop.permute.xlu0 %249
      %253 = vset.pattern.permute.xlu0 0
      %254 = vperm.xlu0 %253, %v219
      %v255 = vpop.permute.xlu0 %254
      %258 = vset.pattern.permute.xlu0 0
      %259 = vperm.xlu0 %258, %v220
      %v260 = vpop.permute.xlu0 %259
      %263 = vset.pattern.permute.xlu0 0
      %264 = vperm.xlu0 %263, %v221
      %v265 = vpop.permute.xlu0 %264
      %268 = vset.pattern.permute.xlu0 0
      %269 = vperm.xlu0 %268, %v222
      %v270 = vpop.permute.xlu0 %269
      %273 = vset.pattern.permute.xlu0 0
      %274 = vperm.xlu0 %273, %v223
      %v275 = vpop.permute.xlu0 %274
      %278 = vset.pattern.permute.xlu0 0
      %279 = vperm.xlu0 %278, %v224
      %v280 = vpop.permute.xlu0 %279
      %283 = vset.pattern.permute.xlu0 0
      %284 = vperm.xlu0 %283, %v225
      %v285 = vpop.permute.xlu0 %284
      %288 = vset.pattern.permute.xlu0 0
      %289 = vperm.xlu0 %288, %v226
      %v290 = vpop.permute.xlu0 %289
      %293 = vset.pattern.permute.xlu0 0
      %294 = vperm.xlu0 %293, %v227
      %v295 = vpop.permute.xlu0 %294
      %298 = vset.pattern.permute.xlu0 0
      %299 = vperm.xlu0 %298, %v228
      %v300 = vpop.permute.xlu0 %299
      %303 = vset.pattern.permute.xlu0 0
      %304 = vperm.xlu0 %303, %v229
      %v305 = vpop.permute.xlu0 %304
      %308 = vset.pattern.permute.xlu0 0
      %309 = vperm.xlu0 %308, %v230
      %v310 = vpop.permute.xlu0 %309
      %vm312 = vcmask 261120
      %v314 = vsel %vm312, %v199, 0
      %v317 = vsel %vm312, %v200, 0
      %v320 = vsel %vm312, %v201, 0
      %v323 = vsel %vm312, %v202, 0
      %v326 = vsel %vm312, %v203, 0
      %v329 = vsel %vm312, %v204, 0
      %v332 = vsel %vm312, %v205, 0
      %v335 = vsel %vm312, %v206, 0
      %v338 = vsel %vm312, %v207, 0
      %v341 = vsel %vm312, %v208, 0
      %v344 = vsel %vm312, %v209, 0
      %v347 = vsel %vm312, %v210, 0
      %v350 = vsel %vm312, %v211, 0
      %v353 = vsel %vm312, %v212, 0
      %v356 = vsel %vm312, %v213, 0
      %v359 = vsel %vm312, %v214, 0
      %v362 = vsel %vm312, %v231, 0
      %364 = vmatpush.xpose.msra.mxu0 0.0
      %365 = vmatpush.xpose.msra.mxu0 0.0
      %366 = vmatpush.xpose.msra.mxu0 0.0
      %367 = vmatpush.xpose.msra.mxu0 0.0
      %368 = vmatpush.xpose.msra.mxu0 0.0
      %369 = vmatpush.xpose.msra.mxu0 0.0
      %370 = vmatpush.xpose.msra.mxu0 0.0
      %371 = vmatpush.xpose.msra.mxu0 0.0
      %372 = vmatpush.xpose.msra.mxu0 0.0
      %373 = vmatpush.xpose.msra.mxu0 0.0
      %374 = vmatpush.xpose.msra.mxu0 0.0
      %375 = vmatpush.xpose.msra.mxu0 0.0
      %376 = vmatpush.xpose.msra.mxu0 0.0
      %377 = vmatpush.xpose.msra.mxu0 0.0
      %378 = vmatpush.xpose.msra.mxu0 0.0
      %379 = vmatpush.xpose.msra.mxu0 %v362
      %380 = vmatmul.f32.gmra.mxu0 %v314
      %v381 = vpop.f32.mrf.mxu0
      %v382 = vadd.f32 %v235, %v381
      %383 = vmatmul.f32.gmra.mxu0 %v317
      %v384 = vpop.f32.mrf.mxu0
      %v385 = vadd.f32 %v240, %v384
      %386 = vmatmul.f32.gmra.mxu0 %v320
      %v387 = vpop.f32.mrf.mxu0
      %v388 = vadd.f32 %v245, %v387
      %389 = vmatmul.f32.gmra.mxu0 %v323
      %v390 = vpop.f32.mrf.mxu0
      %v391 = vadd.f32 %v250, %v390
      %392 = vmatmul.f32.gmra.mxu0 %v326
      %v393 = vpop.f32.mrf.mxu0
      %v394 = vadd.f32 %v255, %v393
      %395 = vmatmul.f32.gmra.mxu0 %v329
      %v396 = vpop.f32.mrf.mxu0
      %v397 = vadd.f32 %v260, %v396
      %398 = vmatmul.f32.gmra.mxu0 %v332
      %v399 = vpop.f32.mrf.mxu0
      %v400 = vadd.f32 %v265, %v399
      %401 = vmatmul.f32.gmra.mxu0 %v335
      %v402 = vpop.f32.mrf.mxu0
      %v403 = vadd.f32 %v270, %v402
      %404 = vmatmul.f32.gmra.mxu0 %v338
      %v405 = vpop.f32.mrf.mxu0
      %v406 = vadd.f32 %v275, %v405
      %407 = vmatmul.f32.gmra.mxu0 %v341
      %v408 = vpop.f32.mrf.mxu0
      %v409 = vadd.f32 %v280, %v408
      %410 = vmatmul.f32.gmra.mxu0 %v344
      %v411 = vpop.f32.mrf.mxu0
      %v412 = vadd.f32 %v285, %v411
      %413 = vmatmul.f32.gmra.mxu0 %v347
      %v414 = vpop.f32.mrf.mxu0
      %v415 = vadd.f32 %v290, %v414
      %416 = vmatmul.f32.gmra.mxu0 %v350
      %v417 = vpop.f32.mrf.mxu0
      %v418 = vadd.f32 %v295, %v417
      %419 = vmatmul.f32.gmra.mxu0 %v353
      %v420 = vpop.f32.mrf.mxu0
      %v421 = vadd.f32 %v300, %v420
      %422 = vmatmul.f32.gmra.mxu0 %v356
      %v423 = vpop.f32.mrf.mxu0
      %v424 = vadd.f32 %v305, %v423
      %425 = vmatmul.f32.gmra.mxu0 %v359
      %v426 = vpop.f32.mrf.mxu0
      %v427 = vadd.f32 %v310, %v426
      %428 = vdwg.mxu0
      %vm429 = vcmask 64512
      %430 = vst.msk [vmem:[%s198] sm:$0xff] %vm429, %v382
      %431 = vst.msk [vmem:[%s198 + $0x8] sm:$0xff] %vm429, %v385
      %432 = vst.msk [vmem:[%s198 + $0x10] sm:$0xff] %vm429, %v388
      %433 = vst.msk [vmem:[%s198 + $0x18] sm:$0xff] %vm429, %v391
      %434 = vst.msk [vmem:[%s198 + $0x20] sm:$0xff] %vm429, %v394
      %435 = vst.msk [vmem:[%s198 + $0x28] sm:$0xff] %vm429, %v397
      %436 = vst.msk [vmem:[%s198 + $0x30] sm:$0xff] %vm429, %v400
      %437 = vst.msk [vmem:[%s198 + $0x38] sm:$0xff] %vm429, %v403
      %438 = vst.msk [vmem:[%s198 + $0x40] sm:$0xff] %vm429, %v406
      %439 = vst.msk [vmem:[%s198 + $0x48] sm:$0xff] %vm429, %v409
      %440 = vst.msk [vmem:[%s198 + $0x50] sm:$0xff] %vm429, %v412
      %441 = vst.msk [vmem:[%s198 + $0x58] sm:$0xff] %vm429, %v415
      %442 = vst.msk [vmem:[%s198 + $0x60] sm:$0xff] %vm429, %v418
      %443 = vst.msk [vmem:[%s198 + $0x68] sm:$0xff] %vm429, %v421
      %444 = vst.msk [vmem:[%s198 + $0x70] sm:$0xff] %vm429, %v424
      %445 = vst.msk [vmem:[%s198 + $0x78] sm:$0xff] %vm429, %v427
      %p446 = scmp.lt.s32.totalorder %s18, 7
      %s447 = scalar_select %p446, %s18, 7
      %p448 = scmp.lt.s32.totalorder %s19, 0
      %s449 = scalar_select %p448, %s19, 0
      %s450 = smul.addr %s447, 16
      %s451 = sadd.s32 %s449, %s450
      %s452 = smul.addr %s451, 8
      %s453 = scalar_lea.vmem %s3, %s452
      // Predicated region
      $region33: #{tpu_custom_call.1} parent=31 // pred_check
        %p454 = pneg %p116
      $region34: #{tpu_custom_call.1} parent=31 // pred_check_branch
        %456 = sbr.rel (%p454) target = $region36
      $region35: #{tpu_custom_call.1} parent=31 // pred_region
        _
      $region36: #{tpu_custom_call.1} parent=31 // pred_fallthru
        _
    $region32: #{tpu_custom_call.1} parent=5 // pred_fallthru
      _
    %p457 = scmp.le.s32.totalorder 2, %s9
    // Predicated region
    $region37: #{tpu_custom_call.1} parent=5 // pred_check
      %p458 = pneg %p457
    $region38: #{tpu_custom_call.1} parent=5 // pred_check_branch
      %460 = sbr.rel (%p458) target = $region40
    $region39: #{tpu_custom_call.1} parent=5 // pred_region
      %s461 = ssub.s32 %s9, 2
      // Predicated region
      $region41: #{tpu_custom_call.1} parent=39 // pred_check
        %p462 = pneg %p122
      $region42: #{tpu_custom_call.1} parent=39 // pred_check_branch
        %464 = sbr.rel (%p462) target = $region44
      $region43: #{tpu_custom_call.1} parent=39 // pred_region
        %p465 = scmp.lt.s32.totalorder %s20, 7
        %s466 = scalar_select %p465, %s20, 7
        %p467 = scmp.lt.s32.totalorder %s21, 0
        %s468 = scalar_select %p467, %s21, 0
        %s469 = smul.addr %s466, 16
        %s470 = sadd.s32 %s468, %s469
        %s471 = smul.addr %s470, 8
        %s472 = scalar_lea.vmem %s3, %s471
      $region44: #{tpu_custom_call.1} parent=39 // pred_fallthru
        _
    $region40: #{tpu_custom_call.1} parent=5 // pred_fallthru
      _
  $region6: #{tpu_custom_call.1} parent=0 // loop_footer
    %s13 = sadd.s32 1, %s9
  $region7: #{tpu_custom_call.1} parent=0 // loop_footer_branch
    %8 = sbr.rel target = $region3
  $region8: #{tpu_custom_call.1} parent=0 // loop_exit
    _

</llo_original>
